<compile_context>
chip_gen: v5e
topology: v5e:2x2
jax: 0.10.0
libtpu: 0.0.40
codegen_flags: <defaults>
</compile_context>

<pallas_src>
import functools
import math

import jax
import jax.numpy as jnp
from jax.experimental import pallas as pl
from jax.experimental.pallas import tpu as pltpu

_NEG_INF = -1e9
# Explicit scoped-VMEM limit (defaults are only 16/32 MiB). Tune per generation
# (v5e can go higher, keep headroom under v7x's 64 MiB physical).
_VMEM_LIMIT = 48 * 1024 * 1024


def _cp(dims):
    return pltpu.CompilerParams(dimension_semantics=dims,
                                vmem_limit_bytes=_VMEM_LIMIT)


def _round_up(x, m):
    return ((x + m - 1) // m) * m


def _row_tile(M, target=256):
    """MXU-aligned row tile (256 for v6e/v7x; raise target to 512 on v5e)."""
    if M >= target:
        return target
    return _round_up(M, 8)


def _vocab_tile(Vp):
    for tn in (512, 256, 128):
        if Vp % tn == 0:
            return tn
    return Vp


# ----------------------------------------------------------------------------
# Pallas kernels: linears (optionally fused with residual + LayerNorm)
# ----------------------------------------------------------------------------
def _linear_kernel(x_ref, w_ref, b_ref, o_ref, *, activation):
    x = x_ref[...].astype(jnp.bfloat16)
    y = jnp.dot(x, w_ref[...], preferred_element_type=jnp.float32) + b_ref[...]
    if activation == "relu":
        y = jnp.maximum(y, 0.0)
    elif activation == "sigmoid":
        z = jnp.exp(-jnp.abs(y))
        y = jnp.where(y >= 0.0, 1.0 / (1.0 + z), z / (1.0 + z))
    o_ref[...] = y.astype(o_ref.dtype)


def pallas_linear(x, w, b, activation=None, out_dtype=jnp.float32):
    """act(x @ w + b). w is pre-cast bf16, b pre-shaped [1, N] f32 (done once)."""
    M, K = x.shape
    N = w.shape[1]
    tm = _row_tile(M)
    Mp = _round_up(M, tm)
    if Mp != M:
        x = jnp.pad(x, ((0, Mp - M), (0, 0)))
    y = pl.pallas_call(
        functools.partial(_linear_kernel, activation=activation),
        out_shape=jax.ShapeDtypeStruct((Mp, N), out_dtype),
        grid=(Mp // tm,),
        in_specs=[
            pl.BlockSpec((tm, K), lambda i: (i, 0)),
            # TODO(synk): pipeline_mode=pl.Buffered(1) on the constant weight
            # blocks would halve their VMEM footprint on v7x.
            pl.BlockSpec((K, N), lambda i: (0, 0)),
            pl.BlockSpec((1, N), lambda i: (0, 0)),
        ],
        out_specs=pl.BlockSpec((tm, N), lambda i: (i, 0)),
        compiler_params=_cp(("parallel",)),
    )(x, w, b)
    return y[:M] if Mp != M else y


def _linear_res_ln_kernel(x_ref, w_ref, b_ref, res_ref, g_ref, beta_ref, o_ref,
                          *, eps):
    x = x_ref[...].astype(jnp.bfloat16)
    y = jnp.dot(x, w_ref[...], preferred_element_type=jnp.float32) + b_ref[...]
    y = y + res_ref[...].astype(jnp.float32)
    mu = jnp.mean(y, axis=-1, keepdims=True)
    var = jnp.mean(jnp.square(y - mu), axis=-1, keepdims=True)
    o_ref[...] = ((y - mu) * jax.lax.rsqrt(var + eps) * g_ref[...]
                  + beta_ref[...]).astype(o_ref.dtype)


def pallas_linear_residual_ln(x, w, b, res, g, beta, eps=1e-5):
    """LN(res + x @ w + b) * g + beta, fused into one launch."""
    M, K = x.shape
    N = w.shape[1]
    tm = _row_tile(M)
    Mp = _round_up(M, tm)
    if Mp != M:
        x = jnp.pad(x, ((0, Mp - M), (0, 0)))
        res = jnp.pad(res, ((0, Mp - M), (0, 0)))
    y = pl.pallas_call(
        functools.partial(_linear_res_ln_kernel, eps=eps),
        out_shape=jax.ShapeDtypeStruct((Mp, N), jnp.float32),
        grid=(Mp // tm,),
        in_specs=[
            pl.BlockSpec((tm, K), lambda i: (i, 0)),
            pl.BlockSpec((K, N), lambda i: (0, 0)),
            pl.BlockSpec((1, N), lambda i: (0, 0)),
            pl.BlockSpec((tm, N), lambda i: (i, 0)),
            pl.BlockSpec((1, N), lambda i: (0, 0)),
            pl.BlockSpec((1, N), lambda i: (0, 0)),
        ],
        out_specs=pl.BlockSpec((tm, N), lambda i: (i, 0)),
        compiler_params=_cp(("parallel",)),
    )(x, w, b, res, g, beta)
    return y[:M] if Mp != M else y


def _ffn_res_ln_kernel(x_ref, w1_ref, b1_ref, w2_ref, b2_ref, g_ref, beta_ref,
                       o_ref, *, eps):
    x = x_ref[...]
    xb = x.astype(jnp.bfloat16)
    h = jnp.dot(xb, w1_ref[...], preferred_element_type=jnp.float32) + b1_ref[...]
    h = jnp.maximum(h, 0.0)                                 # hidden stays in VMEM
    y = jnp.dot(h.astype(jnp.bfloat16), w2_ref[...],
                preferred_element_type=jnp.float32) + b2_ref[...]
    y = y + x.astype(jnp.float32)                           # residual
    mu = jnp.mean(y, axis=-1, keepdims=True)
    var = jnp.mean(jnp.square(y - mu), axis=-1, keepdims=True)
    o_ref[...] = ((y - mu) * jax.lax.rsqrt(var + eps) * g_ref[...]
                  + beta_ref[...]).astype(o_ref.dtype)


def pallas_ffn_residual_ln(x, w1, b1, w2, b2, g, beta, eps=1e-5):
    """LN(x + relu(x @ w1 + b1) @ w2 + b2), one launch."""
    M, D = x.shape
    F = w1.shape[1]
    tm = _row_tile(M)
    Mp = _round_up(M, tm)
    if Mp != M:
        x = jnp.pad(x, ((0, Mp - M), (0, 0)))
    y = pl.pallas_call(
        functools.partial(_ffn_res_ln_kernel, eps=eps),
        out_shape=jax.ShapeDtypeStruct((Mp, D), jnp.float32),
        grid=(Mp // tm,),
        in_specs=[
            pl.BlockSpec((tm, D), lambda i: (i, 0)),
            pl.BlockSpec((D, F), lambda i: (0, 0)),
            pl.BlockSpec((1, F), lambda i: (0, 0)),
            pl.BlockSpec((F, D), lambda i: (0, 0)),
            pl.BlockSpec((1, D), lambda i: (0, 0)),
            pl.BlockSpec((1, D), lambda i: (0, 0)),
            pl.BlockSpec((1, D), lambda i: (0, 0)),
        ],
        out_specs=pl.BlockSpec((tm, D), lambda i: (i, 0)),
        compiler_params=_cp(("parallel",)),
    )(x, w1, b1, w2, b2, g, beta)
    return y[:M] if Mp != M else y


# ----------------------------------------------------------------------------
# Pallas kernels: attention (all heads per grid step, lane-dense output)
# ----------------------------------------------------------------------------
def _heads_attention(q_all, k_all, v_all, kbias, *, H, dh, scale, causal,
                     need_attn, inv_heads):
    """q_all:[tq,D] k_all/v_all:[Lk,D] (bf16), kbias:[1,Lk]. Loops heads in-VMEM."""
    tq = q_all.shape[0]
    Lk = k_all.shape[0]
    causal_bias = None
    if causal:
        rows = jax.lax.broadcasted_iota(jnp.int32, (tq, Lk), 0)
        cols = jax.lax.broadcasted_iota(jnp.int32, (tq, Lk), 1)
        causal_bias = jnp.where(cols <= rows, 0.0, _NEG_INF).astype(jnp.float32)
    head_outs = []
    attn_acc = None
    for h in range(H):
        q = q_all[:, h * dh:(h + 1) * dh]
        k = k_all[:, h * dh:(h + 1) * dh]
        v = v_all[:, h * dh:(h + 1) * dh]
        s = jax.lax.dot_general(q, k, (((1,), (1,)), ((), ())),
                                preferred_element_type=jnp.float32) * scale
        s = s + kbias
        if causal:
            s = s + causal_bias
        s_max = jnp.max(s, axis=-1, keepdims=True)
        e = jnp.exp(s - s_max)
        denom = jnp.sum(e, axis=-1, keepdims=True)
        if need_attn:
            p = e / denom                       # exact: these probs are outputs
        else:
            p = e * pl.reciprocal(denom, approx=True)
        head_outs.append(jnp.dot(p.astype(jnp.bfloat16), v,
                                 preferred_element_type=jnp.float32))
        if need_attn:
            c = p * inv_heads
            attn_acc = c if attn_acc is None else attn_acc + c
    return jnp.concatenate(head_outs, axis=-1), attn_acc


def _self_attn_kernel(qkv_ref, kbias_ref, o_ref, *, H, dh, scale, causal):
    D = H * dh
    qkv = qkv_ref[...]                                      # [L, 3D] bf16
    o, _ = _heads_attention(qkv[:, :D], qkv[:, D:2 * D], qkv[:, 2 * D:],
                            kbias_ref[...], H=H, dh=dh, scale=scale,
                            causal=causal, need_attn=False, inv_heads=0.0)
    o_ref[...] = o.astype(o_ref.dtype)


def pallas_self_attention(qkv, kbias, n_heads, causal):
    """qkv:[B,L,3D] bf16 (fused projection), kbias:[B,1,L]. Returns [B,L,D] bf16.
    All heads handled in one grid step -> lane-dense store, no transposes.
    # TODO(synk): flash-style Lq/Lk tiling for long sequences (v7x 64 MiB VMEM).
    """
    B, L, D3 = qkv.shape
    D = D3 // 3
    dh = D // n_heads
    kernel = functools.partial(_self_attn_kernel, H=n_heads, dh=dh,
                               scale=1.0 / math.sqrt(dh), causal=causal)
    return pl.pallas_call(
        kernel,
        out_shape=jax.ShapeDtypeStruct((B, L, D), jnp.bfloat16),
        grid=(B,),
        in_specs=[pl.BlockSpec((None, L, D3), lambda b: (b, 0, 0)),
                  pl.BlockSpec((None, 1, L), lambda b: (b, 0, 0))],
        out_specs=pl.BlockSpec((None, L, D), lambda b: (b, 0, 0)),
        compiler_params=_cp(("parallel",)),
    )(qkv, kbias)


def _cross_attn_kernel(q_ref, kv_ref, kbias_ref, o_ref, *rest,
                       H, dh, scale, need_attn, inv_heads):
    D = H * dh
    kv = kv_ref[...]                                        # [Lk, 2D] bf16
    o, attn = _heads_attention(q_ref[...], kv[:, :D], kv[:, D:], kbias_ref[...],
                               H=H, dh=dh, scale=scale, causal=False,
                               need_attn=need_attn, inv_heads=inv_heads)
    o_ref[...] = o.astype(o_ref.dtype)
    if need_attn:
        rest[0][...] = attn


def pallas_cross_attention(q, kv, kbias, n_heads, need_attn):
    """q:[B,Lq,D] bf16, kv:[B,Lk,2D] bf16, kbias:[B,1,Lk].
    Returns ([B,Lq,D] bf16, head-averaged probs [B,Lq,Lk] f32 or None)."""
    B, Lq, D = q.shape
    Lk = kv.shape[1]
    dh = D // n_heads
    tq = Lq if (Lq <= 256 or Lq % 256 != 0) else 256        # q-tile parallel axis
    kernel = functools.partial(_cross_attn_kernel, H=n_heads, dh=dh,
                               scale=1.0 / math.sqrt(dh),
                               need_attn=need_attn, inv_heads=1.0 / n_heads)
    in_specs = [pl.BlockSpec((None, tq, D), lambda b, qi: (b, qi, 0)),
                pl.BlockSpec((None, Lk, 2 * D), lambda b, qi: (b, 0, 0)),
                pl.BlockSpec((None, 1, Lk), lambda b, qi: (b, 0, 0))]
    o_shape = jax.ShapeDtypeStruct((B, Lq, D), jnp.bfloat16)
    o_spec = pl.BlockSpec((None, tq, D), lambda b, qi: (b, qi, 0))
    if need_attn:
        out_shape = (o_shape, jax.ShapeDtypeStruct((B, Lq, Lk), jnp.float32))
        out_specs = (o_spec,
                     pl.BlockSpec((None, tq, Lk), lambda b, qi: (b, qi, 0)))
    else:
        out_shape = o_shape
        out_specs = o_spec
    res = pl.pallas_call(
        kernel, out_shape=out_shape, grid=(B, Lq // tq),
        in_specs=in_specs, out_specs=out_specs,
        compiler_params=_cp(("parallel", "parallel")),
    )(q, kv, kbias)
    if need_attn:
        return res[0], res[1]
    return res, None


# ----------------------------------------------------------------------------
# Pallas kernel: vocab logits (N-tiled) + fused p_gen sigmoid
# ----------------------------------------------------------------------------
def _dec_out_kernel(y_ref, wv_ref, bv_ref, wg_ref, bg_ref, logits_ref, pgen_ref):
    y = y_ref[...].astype(jnp.bfloat16)
    logits_ref[...] = (jnp.dot(y, wv_ref[...], preferred_element_type=jnp.float32)
                       + bv_ref[...])

    @pl.when(pl.program_id(1) == 0)
    def _():
        g = jnp.dot(y, wg_ref[...], preferred_element_type=jnp.float32) + bg_ref[...]
        z = jnp.exp(-jnp.abs(g))
        pgen_ref[...] = jnp.where(g >= 0.0, 1.0 / (1.0 + z), z / (1.0 + z))


def pallas_decoder_logits(y2d, w_out_p, b_out_p, w_gen_p, b_gen_p):
    """Vocab-tiled logits + p_gen. Weights pre-padded/bf16 at prep time.
    # TODO(synk): a fully fused online-softmax variant would avoid the logits
    # HBM round trip; exact normalization is done in a cheap JAX pass instead.
    """
    M, D = y2d.shape
    Vp = w_out_p.shape[1]
    Gp = w_gen_p.shape[1]
    tm = _row_tile(M)
    Mp = _round_up(M, tm)
    if Mp != M:
        y2d = jnp.pad(y2d, ((0, Mp - M), (0, 0)))
    tn = _vocab_tile(Vp)
    logits, pgen = pl.pallas_call(
        _dec_out_kernel,
        out_shape=(jax.ShapeDtypeStruct((Mp, Vp), jnp.float32),
                   jax.ShapeDtypeStruct((Mp, Gp), jnp.float32)),
        grid=(Mp // tm, Vp // tn),
        in_specs=[
            pl.BlockSpec((tm, D), lambda i, j: (i, 0)),
            pl.BlockSpec((D, tn), lambda i, j: (0, j)),
            pl.BlockSpec((1, tn), lambda i, j: (0, j)),
            pl.BlockSpec((D, Gp), lambda i, j: (0, 0)),
            pl.BlockSpec((1, Gp), lambda i, j: (0, 0)),
        ],
        out_specs=(pl.BlockSpec((tm, tn), lambda i, j: (i, j)),
                   pl.BlockSpec((tm, Gp), lambda i, j: (i, 0))),
        compiler_params=_cp(("parallel", "arbitrary")),
    )(y2d, w_out_p, b_out_p, w_gen_p, b_gen_p)
    if Mp != M:
        logits, pgen = logits[:M], pgen[:M]
    return logits, pgen[:, :1]


# ----------------------------------------------------------------------------
# Plain-JAX glue
# ----------------------------------------------------------------------------
def layer_norm(x, gamma, beta, eps=1e-5):
    mu = jnp.mean(x, axis=-1, keepdims=True)
    var = jnp.mean((x - mu) ** 2, axis=-1, keepdims=True)
    return (x - mu) * jax.lax.rsqrt(var + eps) * gamma + beta


def get_sinusoid_encoding_table(n_position, d_model, padding_idx=None):
    pos = jnp.arange(n_position, dtype=jnp.float32)[:, None]
    i = jnp.arange(d_model)[None, :]
    angle = pos / jnp.power(10000.0, (2.0 * (i // 2).astype(jnp.float32)) / d_model)
    table = jnp.where(i % 2 == 0, jnp.sin(angle), jnp.cos(angle))
    if padding_idx is not None:
        table = table.at[padding_idx].set(0.0)
    return table.astype(jnp.float32)


def _key_bias(mask):
    B, L = mask.shape
    return ((mask.astype(jnp.float32) - 1.0) * 1e9).reshape(B, 1, L)


def embed_tokens(kp, ids):
    B, L = ids.shape
    return kp["embed"][ids] + kp["pos_table"][:L][None, :, :]


# ----------------------------------------------------------------------------
# Model blocks
# ----------------------------------------------------------------------------
def encoder_layer(p, x, key_mask):
    B, L, D = x.shape
    a = p["attn"]
    qkv = pallas_linear(x.reshape(-1, D), a["wqkv"], a["bqkv"],
                        out_dtype=jnp.bfloat16).reshape(B, L, 3 * D)
    o = pallas_self_attention(qkv, _key_bias(key_mask), a["n_heads"], causal=False)
    x = pallas_linear_residual_ln(o.reshape(-1, D), a["wo"], a["bo"],
                                  x.reshape(-1, D), p["ln1_g"], p["ln1_b"]
                                  ).reshape(B, L, D)
    f = p["ffn"]
    x = pallas_ffn_residual_ln(x.reshape(-1, D), f["w1"], f["b1"], f["w2"], f["b2"],
                               p["ln2_g"], p["ln2_b"]).reshape(B, L, D)
    return x


def decoder_layer(p, x, tgt_mask, memory, src_mask, need_attn):
    B, T, D = x.shape
    S = memory.shape[1]
    sa = p["self_attn"]
    qkv = pallas_linear(x.reshape(-1, D), sa["wqkv"], sa["bqkv"],
                        out_dtype=jnp.bfloat16).reshape(B, T, 3 * D)
    o = pallas_self_attention(qkv, _key_bias(tgt_mask), sa["n_heads"], causal=True)
    x = pallas_linear_residual_ln(o.reshape(-1, D), sa["wo"], sa["bo"],
                                  x.reshape(-1, D), p["ln1_g"], p["ln1_b"]
                                  ).reshape(B, T, D)
    ca = p["cross_attn"]
    q = pallas_linear(x.reshape(-1, D), ca["wq"], ca["bq"],
                      out_dtype=jnp.bfloat16).reshape(B, T, D)
    kv = pallas_linear(memory.reshape(-1, D), ca["wkv"], ca["bkv"],
                       out_dtype=jnp.bfloat16).reshape(B, S, 2 * D)
    co, cross_attn = pallas_cross_attention(q, kv, _key_bias(src_mask),
                                            ca["n_heads"], need_attn)
    x = pallas_linear_residual_ln(co.reshape(-1, D), ca["wo"], ca["bo"],
                                  x.reshape(-1, D), p["ln2_g"], p["ln2_b"]
                                  ).reshape(B, T, D)
    f = p["ffn"]
    x = pallas_ffn_residual_ln(x.reshape(-1, D), f["w1"], f["b1"], f["w2"], f["b2"],
                               p["ln3_g"], p["ln3_b"]).reshape(B, T, D)
    return x, cross_attn


def title_attention_merge(p, src_embed, title_embed, src_mask, tlt_mask):
    B, S, D = src_embed.shape
    TL = title_embed.shape[1]
    a = p["attn"]
    q = pallas_linear(src_embed.reshape(-1, D), a["wq"], a["bq"],
                      out_dtype=jnp.bfloat16).reshape(B, S, D)
    kv = pallas_linear(title_embed.reshape(-1, D), a["wkv"], a["bkv"],
                       out_dtype=jnp.bfloat16).reshape(B, TL, 2 * D)
    ctx_o, _ = pallas_cross_attention(q, kv, _key_bias(tlt_mask), a["n_heads"],
                                      need_attn=False)
    ctx = pallas_linear(ctx_o.reshape(-1, D), a["wo"], a["bo"]).reshape(B, S, D)
    gate_in = jnp.concatenate([src_embed, ctx], axis=-1).reshape(-1, 2 * D)
    gate = pallas_linear(gate_in, p["wg"], p["bg"],
                         activation="sigmoid").reshape(B, S, D)
    merged = gate * src_embed + (1.0 - gate) * ctx
    merged = layer_norm(merged, p["ln_g"], p["ln_b"])       # one-off glue
    return merged * src_mask[:, :, None]


def seq2seq_forward(kp, src, src_lens, input_tgt, src_oov, max_num_oov,
                    src_mask, tlt, tlt_lens, tlt_mask):
    # ---------------- encoder (shared weights for src and title) ------------
    xs = embed_tokens(kp, src)
    xt = embed_tokens(kp, tlt)
    for lp in kp["enc_layers"]:
        xs = encoder_layer(lp, xs, src_mask)
        xt = encoder_layer(lp, xt, tlt_mask)

    # ---------------- title attention merge ---------------------------------
    encoder_output = title_attention_merge(kp["merge"], xs, xt, src_mask, tlt_mask)

    # ---------------- decoder -----------------------------------------------
    B, T = input_tgt.shape
    y = embed_tokens(kp, input_tgt)
    # TODO(synk): tgt padding mask hard-coded to ones (no padded targets in demo).
    tgt_mask = jnp.ones((B, T), jnp.float32)
    cross_attn = None
    n_dec = len(kp["dec_layers"])
    for i, lp in enumerate(kp["dec_layers"]):
        y, ca = decoder_layer(lp, y, tgt_mask, encoder_output, src_mask,
                              need_attn=(i == n_dec - 1))
        if ca is not None:
            cross_attn = ca

    D = y.shape[-1]
    vocab_size = kp["vocab_size"]
    logits, p_gen = pallas_decoder_logits(
        y.reshape(-1, D), kp["w_out_p"], kp["b_out_p"], kp["w_gen_p"], kp["b_gen_p"])
    # exact softmax normalization (padded vocab columns carry a -1e9 bias)
    m = jnp.max(logits, axis=-1, keepdims=True)
    e = jnp.exp(logits - m)
    p_vocab = (e / jnp.sum(e, axis=-1, keepdims=True))[:, :vocab_size]
    p_vocab = p_vocab.reshape(B, T, vocab_size)
    p_gen = p_gen.reshape(B, T, 1)

    # pointer-generator copy: scatter-add over the extended vocab
    ext_size = vocab_size + max_num_oov
    vocab_dist_ext = jnp.pad(p_vocab, ((0, 0), (0, 0), (0, max_num_oov)))

    def scatter_copy(attn_b, oov_b):
        return jnp.zeros((attn_b.shape[0], ext_size),
                         jnp.float32).at[:, oov_b].add(attn_b)

    copy_dist = jax.vmap(scatter_copy)(cross_attn, src_oov)
    decoder_dist_all = p_gen * vocab_dist_ext + (1.0 - p_gen) * copy_dist
    attention_dist_all = cross_attn
    return decoder_dist_all, attention_dist_all


# ----------------------------------------------------------------------------
# Parameter init (raw f32) and ONE-TIME kernel-ready preparation
# ----------------------------------------------------------------------------
def _init_linear(key, fan_in, fan_out, scale=0.1):
    w = jax.random.uniform(key, (fan_in, fan_out), jnp.float32, -scale, scale)
    b = jnp.zeros((fan_out,), jnp.float32)
    return w, b


def _init_mha(key, d_model, n_heads):
    ks = jax.random.split(key, 4)
    wq, bq = _init_linear(ks[0], d_model, d_model)
    wk, bk = _init_linear(ks[1], d_model, d_model)
    wv, bv = _init_linear(ks[2], d_model, d_model)
    wo, bo = _init_linear(ks[3], d_model, d_model)
    return {"n_heads": n_heads, "wq": wq, "bq": bq, "wk": wk, "bk": bk,
            "wv": wv, "bv": bv, "wo": wo, "bo": bo}


def _init_ffn(key, d_model, d_ff):
    k1, k2 = jax.random.split(key)
    w1, b1 = _init_linear(k1, d_model, d_ff)
    w2, b2 = _init_linear(k2, d_ff, d_model)
    return {"w1": w1, "b1": b1, "w2": w2, "b2": b2}


def _init_enc_layer(key, d_model, n_heads, d_ff):
    k1, k2 = jax.random.split(key)
    return {"attn": _init_mha(k1, d_model, n_heads),
            "ffn": _init_ffn(k2, d_model, d_ff),
            "ln1_g": jnp.ones((d_model,)), "ln1_b": jnp.zeros((d_model,)),
            "ln2_g": jnp.ones((d_model,)), "ln2_b": jnp.zeros((d_model,))}


def _init_dec_layer(key, d_model, n_heads, d_ff):
    k1, k2, k3 = jax.random.split(key, 3)
    return {"self_attn": _init_mha(k1, d_model, n_heads),
            "cross_attn": _init_mha(k2, d_model, n_heads),
            "ffn": _init_ffn(k3, d_model, d_ff),
            "ln1_g": jnp.ones((d_model,)), "ln1_b": jnp.zeros((d_model,)),
            "ln2_g": jnp.ones((d_model,)), "ln2_b": jnp.zeros((d_model,)),
            "ln3_g": jnp.ones((d_model,)), "ln3_b": jnp.zeros((d_model,))}


def init_params(key, vocab_size, d_model, n_heads, d_ff, n_enc, n_dec, pad_idx=0):
    keys = jax.random.split(key, 6 + n_enc + n_dec)
    embed = jax.random.uniform(keys[0], (vocab_size, d_model), jnp.float32, -0.1, 0.1)
    embed = embed.at[pad_idx].set(0.0)
    merge_k1, merge_k2 = jax.random.split(keys[1])
    wg, bg = _init_linear(merge_k2, 2 * d_model, d_model)
    w_out, b_out = _init_linear(keys[2], d_model, vocab_size)
    w_gen, b_gen = _init_linear(keys[3], d_model, 1)
    return {
        "embed": embed,
        "pos_table": get_sinusoid_encoding_table(3000, d_model, padding_idx=pad_idx),
        "enc_layers": [_init_enc_layer(keys[6 + i], d_model, n_heads, d_ff)
                       for i in range(n_enc)],
        "dec_layers": [_init_dec_layer(keys[6 + n_enc + i], d_model, n_heads, d_ff)
                       for i in range(n_dec)],
        "merge": {"attn": _init_mha(merge_k1, d_model, n_heads),
                  "wg": wg, "bg": bg,
                  "ln_g": jnp.ones((d_model,)), "ln_b": jnp.zeros((d_model,))},
        "w_out": w_out, "b_out": b_out,
        "w_gen": w_gen, "b_gen": b_gen,
    }


def _prep_mha(p, fuse_qkv):
    out = {"n_heads": p["n_heads"],
           "wo": p["wo"].astype(jnp.bfloat16),
           "bo": p["bo"].reshape(1, -1).astype(jnp.float32)}
    if fuse_qkv:
        out["wqkv"] = jnp.concatenate([p["wq"], p["wk"], p["wv"]],
                                      axis=1).astype(jnp.bfloat16)
        out["bqkv"] = jnp.concatenate([p["bq"], p["bk"], p["bv"]]
                                      ).reshape(1, -1).astype(jnp.float32)
    else:
        out["wq"] = p["wq"].astype(jnp.bfloat16)
        out["bq"] = p["bq"].reshape(1, -1).astype(jnp.float32)
        out["wkv"] = jnp.concatenate([p["wk"], p["wv"]], axis=1).astype(jnp.bfloat16)
        out["bkv"] = jnp.concatenate([p["bk"], p["bv"]]
                                     ).reshape(1, -1).astype(jnp.float32)
    return out


def _prep_ffn(p):
    return {"w1": p["w1"].astype(jnp.bfloat16),
            "b1": p["b1"].reshape(1, -1).astype(jnp.float32),
            "w2": p["w2"].astype(jnp.bfloat16),
            "b2": p["b2"].reshape(1, -1).astype(jnp.float32)}


def _prep_ln(g, b):
    return g.reshape(1, -1).astype(jnp.float32), b.reshape(1, -1).astype(jnp.float32)


def prepare_params(raw):
    """One-time conversion to kernel-ready layout: bf16 weights, [1,N] biases,
    fused QKV / KV projections, lane-padded vocab & p_gen heads."""
    D = raw["w_out"].shape[0]
    vocab_size = raw["embed"].shape[0]
    Vp = _round_up(vocab_size, 128)

    def prep_enc(lp):
        g1, b1 = _prep_ln(lp["ln1_g"], lp["ln1_b"])
        g2, b2 = _prep_ln(lp["ln2_g"], lp["ln2_b"])
        return {"attn": _prep_mha(lp["attn"], fuse_qkv=True),
                "ffn": _prep_ffn(lp["ffn"]),
                "ln1_g": g1, "ln1_b": b1, "ln2_g": g2, "ln2_b": b2}

    def prep_dec(lp):
        g1, b1 = _prep_ln(lp["ln1_g"], lp["ln1_b"])
        g2, b2 = _prep_ln(lp["ln2_g"], lp["ln2_b"])
        g3, b3 = _prep_ln(lp["ln3_g"], lp["ln3_b"])
        return {"self_attn": _prep_mha(lp["self_attn"], fuse_qkv=True),
                "cross_attn": _prep_mha(lp["cross_attn"], fuse_qkv=False),
                "ffn": _prep_ffn(lp["ffn"]),
                "ln1_g": g1, "ln1_b": b1, "ln2_g": g2, "ln2_b": b2,
                "ln3_g": g3, "ln3_b": b3}

    mg, mb = _prep_ln(raw["merge"]["ln_g"], raw["merge"]["ln_b"])
    w_out_p = jnp.zeros((D, Vp), jnp.float32).at[:, :vocab_size].set(raw["w_out"])
    b_out_p = jnp.full((1, Vp), _NEG_INF, jnp.float32).at[0, :vocab_size].set(raw["b_out"])
    w_gen_p = jnp.zeros((D, 128), jnp.float32).at[:, :1].set(raw["w_gen"])
    b_gen_p = jnp.zeros((1, 128), jnp.float32).at[0, :1].set(raw["b_gen"])
    return {
        "vocab_size": vocab_size,
        "embed": raw["embed"],
        "pos_table": raw["pos_table"],
        "enc_layers": [prep_enc(lp) for lp in raw["enc_layers"]],
        "dec_layers": [prep_dec(lp) for lp in raw["dec_layers"]],
        "merge": {"attn": _prep_mha(raw["merge"]["attn"], fuse_qkv=False),
                  "wg": raw["merge"]["wg"].astype(jnp.bfloat16),
                  "bg": raw["merge"]["bg"].reshape(1, -1).astype(jnp.float32),
                  "ln_g": mg, "ln_b": mb},
        "w_out_p": w_out_p.astype(jnp.bfloat16), "b_out_p": b_out_p,
        "w_gen_p": w_gen_p.astype(jnp.bfloat16), "b_gen_p": b_gen_p,
    }


# ----------------------------------------------------------------------------
# Demo
# ----------------------------------------------------------------------------
if __name__ == "__main__":
    B, S, T, TL = 2, 16, 16, 16
    vocab_size, d_model, n_heads, d_ff = 300, 128, 4, 256
    n_enc, n_dec = 1, 1
    max_num_oov = 5
    PAD = 0

    root = jax.random.PRNGKey(0)
    kp_key, k1, k2, k3, k4 = jax.random.split(root, 5)
    raw_params = init_params(kp_key, vocab_size, d_model, n_heads, d_ff,
                             n_enc, n_dec, PAD)
    params = prepare_params(raw_params)          # one-time cast / pad / fuse

    src = jax.random.randint(k1, (B, S), 1, vocab_size)
    tlt = jax.random.randint(k2, (B, TL), 1, vocab_size)
    input_tgt = jax.random.randint(k3, (B, T), 1, vocab_size)
    src_oov = jax.random.randint(k4, (B, S), 1, vocab_size + max_num_oov)

    # lengths / masks (some padded positions in each batch)
    src_lens = [S - 3, S]
    tlt_lens = [TL, TL - 2]
    src_mask = jnp.ones((B, S), jnp.float32).at[0, S - 3:].set(0.0)
    tlt_mask = jnp.ones((B, TL), jnp.float32).at[1, TL - 2:].set(0.0)
    src = jnp.where(src_mask > 0, src, PAD)
    src_oov = jnp.where(src_mask > 0, src_oov, PAD)
    tlt = jnp.where(tlt_mask > 0, tlt, PAD)

    decoder_dist_all, attention_dist_all = seq2seq_forward(
        params, src, src_lens, input_tgt, src_oov, max_num_oov,
        src_mask, tlt, tlt_lens, tlt_mask)

    jax.block_until_ready(decoder_dist_all)
    jax.block_until_ready(attention_dist_all)
    assert decoder_dist_all.shape == (B, T, vocab_size + max_num_oov)
    assert attention_dist_all.shape == (B, T, S)
    assert bool(jnp.all(jnp.isfinite(decoder_dist_all)))
    assert bool(jnp.all(jnp.isfinite(attention_dist_all)))
    print("KERNEL_OK")
</pallas_src>

<mosaic_0001>
module attributes {stable_mosaic.version = 11 : i64} {
  func.func @_linear_kernel(%arg0: i32, %arg1: memref<32x128xf32, #tpu.memory_space<vmem>>, %arg2: memref<128x384xbf16, #tpu.memory_space<vmem>>, %arg3: memref<1x384xf32, #tpu.memory_space<vmem>>, %arg4: memref<32x384xbf16, #tpu.memory_space<vmem>>) attributes {dimension_semantics = [#tpu.dimension_semantics<parallel>], iteration_bounds = array<i64: 1>, scalar_prefetch = 0 : i64, scratch_operands = 0 : i64, tpu.core_type = #tpu.core_type<tc>, window_params = [{transform_indices = @transform_0, window_bounds = array<i64: 32, 128>}, {pipeline_mode = #tpu.pipeline_mode<synchronous>, transform_indices = @transform_1, window_bounds = array<i64: 128, 384>}, {pipeline_mode = #tpu.pipeline_mode<synchronous>, transform_indices = @transform_2, window_bounds = array<i64: 1, 384>}, {transform_indices = @transform_3, window_bounds = array<i64: 32, 384>}]} {
    %c0 = arith.constant 0 : index
    %c0_0 = arith.constant 0 : index
    %0 = vector.load %arg1[%c0, %c0_0] : memref<32x128xf32, #tpu.memory_space<vmem>>, vector<32x128xf32>
    %1 = arith.truncf %0 : vector<32x128xf32> to vector<32x128xbf16>
    %c0_1 = arith.constant 0 : index
    %c0_2 = arith.constant 0 : index
    %2 = vector.load %arg2[%c0_1, %c0_2] : memref<128x384xbf16, #tpu.memory_space<vmem>>, vector<128x384xbf16>
    %cst = arith.constant dense<0.000000e+00> : vector<32x384xf32>
    %3 = tpu.matmul %1, %2, %cst {dimension_numbers = #tpu.dot_dimension_numbers<[1], [0], [0], [1], [0, 0, 1, 1], [], []>} : vector<32x128xbf16>, vector<128x384xbf16>, vector<32x384xf32> -> vector<32x384xf32>
    %c0_3 = arith.constant 0 : index
    %c0_4 = arith.constant 0 : index
    %4 = vector.load %arg3[%c0_3, %c0_4] : memref<1x384xf32, #tpu.memory_space<vmem>>, vector<1x384xf32>
    %5 = vector.broadcast %4 : vector<1x384xf32> to vector<32x384xf32>
    %6 = arith.addf %3, %5 : vector<32x384xf32>
    %7 = arith.truncf %6 : vector<32x384xf32> to vector<32x384xbf16>
    %c0_5 = arith.constant 0 : index
    %c0_6 = arith.constant 0 : index
    %8 = vector.load %arg4[%c0_5, %c0_6] : memref<32x384xbf16, #tpu.memory_space<vmem>>, vector<32x384xbf16>
    tpu.vector_store %arg4[%c0_5, %c0_6], %7 {strides = array<i32>} : memref<32x384xbf16, #tpu.memory_space<vmem>>, vector<32x384xbf16>,
    return
  }
  func.func @transform_0(%arg0: i32) -> (i32, i32) {
    %c0_i32 = arith.constant 0 : i32
    %c0_i32_0 = arith.constant 0 : i32
    return %arg0, %c0_i32 : i32, i32
  }
  func.func @transform_1(%arg0: i32) -> (i32, i32) {
    %c0_i32 = arith.constant 0 : i32
    %c0_i32_0 = arith.constant 0 : i32
    %c0_i32_1 = arith.constant 0 : i32
    return %c0_i32, %c0_i32_0 : i32, i32
  }
  func.func @transform_2(%arg0: i32) -> (i32, i32) {
    %c0_i32 = arith.constant 0 : i32
    %c0_i32_0 = arith.constant 0 : i32
    %c0_i32_1 = arith.constant 0 : i32
    return %c0_i32, %c0_i32_0 : i32, i32
  }
  func.func @transform_3(%arg0: i32) -> (i32, i32) {
    %c0_i32 = arith.constant 0 : i32
    %c0_i32_0 = arith.constant 0 : i32
    return %arg0, %c0_i32 : i32, i32
  }
}

</mosaic_0001>

<llo_original>
// kernel: tpu_custom_call.1
$region0: #{tpu_custom_call.1}
  #allocation0 [shape = 'u32[]', space=smem, size = 0x4, offset = 0x4, fixed_abs, tag = 'smem constant byte address 0x4 - core index']
  #allocation1 [shape = 'u32[72,128]{1,0:T(1,128)}', space=vmem, size = 0x9000, scoped, tag = 'internal scratch']
  %s0 = inlined_call_operand.hbm [shape: f32[32,128], index: 0, kind: input, shape index: {}]
  %s1 = inlined_call_operand.hbm [shape: bf16[128,384], index: 1, kind: input, shape index: {}]
  %s2 = inlined_call_operand.hbm [shape: f32[1,384], index: 2, kind: input, shape index: {}]
  %s3 = inlined_call_operand.hbm [shape: bf16[32,384], index: 3, kind: output, shape index: {}]
  %s4 = sld [smem:[#allocation0]]
  $region34: #{tpu_custom_call.1} parent=0
    _
  %s6 = ssub.s32 1, %s4
  %s7 = scalar_select 0, %s6, %s4
  $region1: #{tpu_custom_call.1} parent=0
    #allocation2 [shape = 'u8[16384]{0}', space=vmem, size = 0x4000, scoped, tag = 'input window, operand 0, single buffered']
    #allocation3 [shape = 's32[1]{0}', space=sflag, size = 0x4, scoped, tag = 'scoped memory for tpu_custom_call.1']
    #allocation4 [shape = 's32[1]{0}', space=sflag, size = 0x4, scoped, tag = 'scoped memory for tpu_custom_call.1']
    #allocation5 [shape = 'u8[98304]{0}', space=vmem, size = 0x18000, scoped, tag = 'input window, operand 1, single buffered']
    #allocation6 [shape = 's32[1]{0}', space=sflag, size = 0x4, scoped, tag = 'scoped memory for tpu_custom_call.1']
    #allocation7 [shape = 'u8[1536]{0}', space=vmem, size = 0x800, scoped, tag = 'input window, operand 2, single buffered']
    #allocation8 [shape = 'u8[24576]{0}', space=vmem, size = 0x6000, scoped, tag = 'output window, operand 0, single buffered']
    %8 = vsyncpa [#allocation3], 0
    %9 = vsyncpa [#allocation6], 0
    %10 = vsyncpa [#allocation4], 0
    // Predicated region
    $region2: #{tpu_custom_call.1} parent=1 // pred_check
      _
    $region3: #{tpu_custom_call.1} parent=1 // pred_check_branch
      %12 = sbr.rel (0) target = $region5
    $region4: #{tpu_custom_call.1} parent=1 // pred_region
      %14 = vsyncadd [#allocation3], 0
      %s15 = sshll.u32 %s0, 4
      %s16 = int_to_ptr.hbm [resolvable:$true] %s15
      %s17 = sshll.u32 [#allocation2], 4
      %s18 = int_to_ptr.vmem [resolvable:$true] %s17
      %23 = dma.hbm_to_vmem [thread:$0]  %s16, 512, %s18, [#allocation3], 128, 128, 8
    $region5: #{tpu_custom_call.1} parent=1 // pred_fallthru
      _
    // Predicated region
    $region6: #{tpu_custom_call.1} parent=1 // pred_check
      _
    $region7: #{tpu_custom_call.1} parent=1 // pred_check_branch
      %25 = sbr.rel (0) target = $region9
    $region8: #{tpu_custom_call.1} parent=1 // pred_region
      %27 = vsyncadd [#allocation6], 0
      %s28 = sshll.u32 %s1, 4
      %s29 = int_to_ptr.hbm [resolvable:$true] %s28
      %s30 = sshll.u32 [#allocation5], 4
      %s31 = int_to_ptr.vmem [resolvable:$true] %s30
      %36 = dma.hbm_to_vmem [thread:$0]  %s29, 3072, %s31, [#allocation6], 192, 192, 12
    $region9: #{tpu_custom_call.1} parent=1 // pred_fallthru
      _
    // Predicated region
    $region10: #{tpu_custom_call.1} parent=1 // pred_check
      _
    $region11: #{tpu_custom_call.1} parent=1 // pred_check_branch
      %38 = sbr.rel (0) target = $region13
    $region12: #{tpu_custom_call.1} parent=1 // pred_region
      %40 = vsyncadd [#allocation6], 0
      %s42 = sshll.u32 %s2, 4
      %s43 = int_to_ptr.hbm [resolvable:$true] %s42
      %s44 = sshll.u32 [#allocation7], 4
      %s45 = int_to_ptr.vmem [resolvable:$true] %s44
      %47 = dma.hbm_to_vmem [thread:$0]  %s43, 48, %s45, [#allocation6]
    $region13: #{tpu_custom_call.1} parent=1 // pred_fallthru
      _
    // Predicated region
    $region14: #{tpu_custom_call.1} parent=1 // pred_check
      _
    $region15: #{tpu_custom_call.1} parent=1 // pred_check_branch
      %49 = sbr.rel (0) target = $region17
    $region16: #{tpu_custom_call.1} parent=1 // pred_region
      %51 = dma.done [#allocation3], 512
    $region17: #{tpu_custom_call.1} parent=1 // pred_fallthru
      _
    // Predicated region
    $region18: #{tpu_custom_call.1} parent=1 // pred_check
      _
    $region19: #{tpu_custom_call.1} parent=1 // pred_check_branch
      %53 = sbr.rel (0) target = $region21
    $region20: #{tpu_custom_call.1} parent=1 // pred_region
      %55 = dma.done [#allocation6], 3072
    $region21: #{tpu_custom_call.1} parent=1 // pred_fallthru
      _
    // Predicated region
    $region22: #{tpu_custom_call.1} parent=1 // pred_check
      _
    $region23: #{tpu_custom_call.1} parent=1 // pred_check_branch
      %57 = sbr.rel (0) target = $region25
    $region24: #{tpu_custom_call.1} parent=1 // pred_region
      %59 = dma.done [#allocation6], 48
    $region25: #{tpu_custom_call.1} parent=1 // pred_fallthru
      _
    %v60 = vld [vmem:[#allocation2] sm:$0xff]
    %v61 = vld [vmem:[#allocation2 + $0x8] sm:$0xff]
    %v62 = vld [vmem:[#allocation2 + $0x10] sm:$0xff]
    %v63 = vld [vmem:[#allocation2 + $0x18] sm:$0xff]
    %v64 = vpack.c.bf16 %v61, %v60
    %v65 = vpack.c.bf16 %v63, %v62
    %v66 = vld [vmem:[#allocation5] sm:$0xff]
    %v67 = vld [vmem:[#allocation5 + $0x8] sm:$0xf]
    %v68 = vld [vmem:[#allocation5 + $0xc] sm:$0xff]
    %v69 = vld [vmem:[#allocation5 + $0x14] sm:$0xf]
    %v70 = vld [vmem:[#allocation5 + $0x18] sm:$0xff]
    %v71 = vld [vmem:[#allocation5 + $0x20] sm:$0xf]
    %v72 = vld [vmem:[#allocation5 + $0x24] sm:$0xff]
    %v73 = vld [vmem:[#allocation5 + $0x2c] sm:$0xf]
    %v74 = vld [vmem:[#allocation5 + $0x30] sm:$0xff]
    %v75 = vld [vmem:[#allocation5 + $0x38] sm:$0xf]
    %v76 = vld [vmem:[#allocation5 + $0x3c] sm:$0xff]
    %v77 = vld [vmem:[#allocation5 + $0x44] sm:$0xf]
    %v78 = vld [vmem:[#allocation5 + $0x48] sm:$0xff]
    %v79 = vld [vmem:[#allocation5 + $0x50] sm:$0xf]
    %v80 = vld [vmem:[#allocation5 + $0x54] sm:$0xff]
    %v81 = vld [vmem:[#allocation5 + $0x5c] sm:$0xf]
    %v82 = vld [vmem:[#allocation5 + $0x60] sm:$0xff]
    %v83 = vld [vmem:[#allocation5 + $0x68] sm:$0xf]
    %v84 = vld [vmem:[#allocation5 + $0x6c] sm:$0xff]
    %v85 = vld [vmem:[#allocation5 + $0x74] sm:$0xf]
    %v86 = vld [vmem:[#allocation5 + $0x78] sm:$0xff]
    %v87 = vld [vmem:[#allocation5 + $0x80] sm:$0xf]
    %v88 = vld [vmem:[#allocation5 + $0x84] sm:$0xff]
    %v89 = vld [vmem:[#allocation5 + $0x8c] sm:$0xf]
    %v90 = vld [vmem:[#allocation5 + $0x90] sm:$0xff]
    %v91 = vld [vmem:[#allocation5 + $0x98] sm:$0xf]
    %v92 = vld [vmem:[#allocation5 + $0x9c] sm:$0xff]
    %v93 = vld [vmem:[#allocation5 + $0xa4] sm:$0xf]
    %v94 = vld [vmem:[#allocation5 + $0xa8] sm:$0xff]
    %v95 = vld [vmem:[#allocation5 + $0xb0] sm:$0xf]
    %v96 = vld [vmem:[#allocation5 + $0xb4] sm:$0xff]
    %v97 = vld [vmem:[#allocation5 + $0xbc] sm:$0xf]
    %v98 = vld [vmem:[#allocation7] sm:$0x7]
    %v100 = vperm.slane %v98, 0
    %v101 = vperm.slane %v98, 1
    %v102 = vperm.slane %v98, 2
    %v138 = vunpack.c.l.b16 %v66
    %v139 = vunpack.c.h.b16 %v66
    %v140 = vunpack.c.l.b16 %v67
    %v141 = vunpack.c.l.b16 %v68
    %v142 = vunpack.c.h.b16 %v68
    %v143 = vunpack.c.l.b16 %v69
    %v144 = vunpack.c.l.b16 %v70
    %v145 = vunpack.c.h.b16 %v70
    %v146 = vunpack.c.l.b16 %v71
    %v147 = vunpack.c.l.b16 %v72
    %v148 = vunpack.c.h.b16 %v72
    %v149 = vunpack.c.l.b16 %v73
    %v150 = vunpack.c.l.b16 %v74
    %v151 = vunpack.c.h.b16 %v74
    %v152 = vunpack.c.l.b16 %v75
    %v153 = vunpack.c.l.b16 %v76
    %v154 = vunpack.c.h.b16 %v76
    %v155 = vunpack.c.l.b16 %v77
    %v156 = vunpack.c.l.b16 %v78
    %v157 = vunpack.c.h.b16 %v78
    %v158 = vunpack.c.l.b16 %v79
    %v159 = vunpack.c.l.b16 %v80
    %v160 = vunpack.c.h.b16 %v80
    %v161 = vunpack.c.l.b16 %v81
    %v162 = vunpack.c.l.b16 %v82
    %v163 = vunpack.c.h.b16 %v82
    %v164 = vunpack.c.l.b16 %v83
    %v165 = vunpack.c.l.b16 %v84
    %v166 = vunpack.c.h.b16 %v84
    %v167 = vunpack.c.l.b16 %v85
    %v168 = vunpack.c.l.b16 %v86
    %v169 = vunpack.c.h.b16 %v86
    %v170 = vunpack.c.l.b16 %v87
    %v171 = vunpack.c.l.b16 %v88
    %v172 = vunpack.c.h.b16 %v88
    %v173 = vunpack.c.l.b16 %v89
    %v174 = vunpack.c.l.b16 %v90
    %v175 = vunpack.c.h.b16 %v90
    %v176 = vunpack.c.l.b16 %v91
    %v177 = vunpack.c.l.b16 %v92
    %v178 = vunpack.c.h.b16 %v92
    %v179 = vunpack.c.l.b16 %v93
    %v180 = vunpack.c.l.b16 %v94
    %v181 = vunpack.c.h.b16 %v94
    %v182 = vunpack.c.l.b16 %v95
    %v183 = vunpack.c.l.b16 %v96
    %v184 = vunpack.c.h.b16 %v96
    %v185 = vunpack.c.l.b16 %v97
    %v186 = vpack.c.b16 %v141, %v138
    %v187 = vpack.c.b16 %v142, %v139
    %v188 = vpack.c.b16 %v143, %v140
    %v189 = vpack.c.b16 %v147, %v144
    %v190 = vpack.c.b16 %v148, %v145
    %v191 = vpack.c.b16 %v149, %v146
    %v192 = vpack.c.b16 %v153, %v150
    %v193 = vpack.c.b16 %v154, %v151
    %v194 = vpack.c.b16 %v155, %v152
    %v195 = vpack.c.b16 %v159, %v156
    %v196 = vpack.c.b16 %v160, %v157
    %v197 = vpack.c.b16 %v161, %v158
    %v198 = vpack.c.b16 %v165, %v162
    %v199 = vpack.c.b16 %v166, %v163
    %v200 = vpack.c.b16 %v167, %v164
    %v201 = vpack.c.b16 %v171, %v168
    %v202 = vpack.c.b16 %v172, %v169
    %v203 = vpack.c.b16 %v173, %v170
    %v204 = vpack.c.b16 %v177, %v174
    %v205 = vpack.c.b16 %v178, %v175
    %v206 = vpack.c.b16 %v179, %v176
    %v207 = vpack.c.b16 %v183, %v180
    %v208 = vpack.c.b16 %v184, %v181
    %v209 = vpack.c.b16 %v185, %v182
    %234 = vmatpush.bf16.msra.mxu0 %v207
    %235 = vmatpush.bf16.msra.mxu0 %v204
    %236 = vmatpush.bf16.msra.mxu0 %v201
    %237 = vmatpush.bf16.msra.mxu0 %v198
    %238 = vmatpush.bf16.msra.mxu0 %v195
    %239 = vmatpush.bf16.msra.mxu0 %v192
    %240 = vmatpush.bf16.msra.mxu0 %v189
    %241 = vmatpush.bf16.msra.mxu0 %v186
    %242 = vmatmul.bf16.gmra.mxu0 %v64
    %v243 = vpop.f32.mrf.mxu0
    %v244 = vadd.f32 %v100, %v243
    %v245 = vpop.f32.mrf.mxu0
    %v246 = vadd.f32 %v100, %v245
    %247 = vmatmul.bf16.gmra.mxu0 %v65
    %v248 = vpop.f32.mrf.mxu0
    %v249 = vadd.f32 %v100, %v248
    %v250 = vpop.f32.mrf.mxu0
    %v251 = vadd.f32 %v100, %v250
    %252 = vdwg.mxu0
    %253 = vmatpush.bf16.msra.mxu0 %v208
    %254 = vmatpush.bf16.msra.mxu0 %v205
    %255 = vmatpush.bf16.msra.mxu0 %v202
    %256 = vmatpush.bf16.msra.mxu0 %v199
    %257 = vmatpush.bf16.msra.mxu0 %v196
    %258 = vmatpush.bf16.msra.mxu0 %v193
    %259 = vmatpush.bf16.msra.mxu0 %v190
    %260 = vmatpush.bf16.msra.mxu0 %v187
    %261 = vmatmul.bf16.gmra.mxu0 %v64
    %v262 = vpop.f32.mrf.mxu0
    %v263 = vadd.f32 %v101, %v262
    %v264 = vpop.f32.mrf.mxu0
    %v265 = vadd.f32 %v101, %v264
    %266 = vmatmul.bf16.gmra.mxu0 %v65
    %v267 = vpop.f32.mrf.mxu0
    %v268 = vadd.f32 %v101, %v267
    %v269 = vpop.f32.mrf.mxu0
    %v270 = vadd.f32 %v101, %v269
    %271 = vdwg.mxu0
    %272 = vmatpush.bf16.msra.mxu0 %v209
    %273 = vmatpush.bf16.msra.mxu0 %v206
    %274 = vmatpush.bf16.msra.mxu0 %v203
    %275 = vmatpush.bf16.msra.mxu0 %v200
    %276 = vmatpush.bf16.msra.mxu0 %v197
    %277 = vmatpush.bf16.msra.mxu0 %v194
    %278 = vmatpush.bf16.msra.mxu0 %v191
    %279 = vmatpush.bf16.msra.mxu0 %v188
    %280 = vmatmul.bf16.gmra.mxu0 %v64
    %v281 = vpop.f32.mrf.mxu0
    %v282 = vadd.f32 %v102, %v281
    %v283 = vpop.f32.mrf.mxu0
    %v284 = vadd.f32 %v102, %v283
    %285 = vmatmul.bf16.gmra.mxu0 %v65
    %v286 = vpop.f32.mrf.mxu0
    %v287 = vadd.f32 %v102, %v286
    %v288 = vpop.f32.mrf.mxu0
    %v289 = vadd.f32 %v102, %v288
    %290 = vdwg.mxu0
    %v291 = vpack.c.bf16 %v263, %v244
    %v292 = vpack.c.bf16 %v282, %v282
    %v293 = vpack.c.bf16 %v265, %v246
    %v294 = vpack.c.bf16 %v284, %v284
    %v295 = vpack.c.bf16 %v268, %v249
    %v296 = vpack.c.bf16 %v287, %v287
    %v297 = vpack.c.bf16 %v270, %v251
    %v298 = vpack.c.bf16 %v289, %v289
    %299 = vst [vmem:[#allocation8] sm:$0xff] %v291
    %300 = vst [vmem:[#allocation8 + $0x8] sm:$0xf] %v292
    %301 = vst [vmem:[#allocation8 + $0xc] sm:$0xff] %v293
    %302 = vst [vmem:[#allocation8 + $0x14] sm:$0xf] %v294
    %303 = vst [vmem:[#allocation8 + $0x18] sm:$0xff] %v295
    %304 = vst [vmem:[#allocation8 + $0x20] sm:$0xf] %v296
    %305 = vst [vmem:[#allocation8 + $0x24] sm:$0xff] %v297
    %306 = vst [vmem:[#allocation8 + $0x2c] sm:$0xf] %v298
    // Predicated region
    $region26: #{tpu_custom_call.1} parent=1 // pred_check
      _
    $region27: #{tpu_custom_call.1} parent=1 // pred_check_branch
      %308 = sbr.rel (0) target = $region29
    $region28: #{tpu_custom_call.1} parent=1 // pred_region
      %310 = vsyncadd [#allocation4], 0
      %s311 = sshll.u32 [#allocation8], 4
      %s312 = int_to_ptr.vmem [resolvable:$true] %s311
      %s313 = sshll.u32 %s3, 4
      %s314 = int_to_ptr.hbm [resolvable:$true] %s313
      %319 = dma.vmem_to_hbm [thread:$0]  %s312, 768, %s314, [#allocation4], 192, 192, 12
    $region29: #{tpu_custom_call.1} parent=1 // pred_fallthru
      _
    // Predicated region
    $region30: #{tpu_custom_call.1} parent=1 // pred_check
      _
    $region31: #{tpu_custom_call.1} parent=1 // pred_check_branch
      %321 = sbr.rel (0) target = $region33
    $region32: #{tpu_custom_call.1} parent=1 // pred_region
      %323 = dma.done [#allocation4], 768
    $region33: #{tpu_custom_call.1} parent=1 // pred_fallthru
      _
    %324 = vsyncpa [#allocation3], 1
    %325 = vsyncpa [#allocation6], 1
    %326 = vsyncpa [#allocation4], 1

</llo_original>
